<compile_context>
chip_gen: v7x
topology: tpu7x:2x2x1
jax: 0.10.0
libtpu: 0.0.40
codegen_flags: <defaults>
</compile_context>

<pallas_src>
import jax
import jax.numpy as jnp
from jax.experimental import pallas as pl
from jax.experimental.pallas import tpu as pltpu


# ---------------------------------------------------------------------------
# Kernels
# ---------------------------------------------------------------------------

def _cond_aug_kernel_tpu(seed_ref, mu_ref, sigma_ref, out_ref):
    """In-kernel hardware PRNG path (TPU only)."""
    # Distinct PRNG stream per grid tile (and per megacore shard).
    pltpu.prng_seed(seed_ref[0] + pl.program_id(0))
    noise = pltpu.stateful_normal(mu_ref.shape, jnp.float32)
    out_ref[...] = (
        noise * sigma_ref[...].astype(jnp.float32) + mu_ref[...].astype(jnp.float32)
    ).astype(out_ref.dtype)


def _cond_aug_kernel_precomputed(noise_ref, mu_ref, sigma_ref, out_ref):
    """Fallback path: noise is an extra input stream, kernel just fuses the FMA."""
    out_ref[...] = (
        noise_ref[...].astype(jnp.float32) * sigma_ref[...].astype(jnp.float32)
        + mu_ref[...].astype(jnp.float32)
    ).astype(out_ref.dtype)


# ---------------------------------------------------------------------------
# Wrapper
# ---------------------------------------------------------------------------

def _row_tile(B: int, D: int, dtype) -> int:
    """Pick a row-tile size: ~1 MiB per pipeline buffer, sublane-aligned."""
    itemsize = jnp.dtype(dtype).itemsize
    sub = max(8, 32 // itemsize)          # 8 rows (f32), 16 (bf16), 32 (int8)
    target_bytes = 1 << 20                # ~1 MiB per buffer -> fits VMEM on v7x too
    rows = target_bytes // max(D * itemsize, 1)
    if rows >= B:
        return B                          # full-extent block: always layout-legal
    return max(sub, (rows // sub) * sub)  # tiled block: keep (8,128)-aligned rows


def conditioning_augmentation(mu: jax.Array, sigma: jax.Array, seed=0) -> jax.Array:
    """res = N(0,1) * sigma + mu  (reparameterization trick).

    mu, sigma: (B, D) float arrays of the same shape/dtype.
    seed:      integer scalar (Python int or int32 array) seeding the noise.
    """
    assert mu.shape == sigma.shape and mu.dtype == sigma.dtype
    B, D = mu.shape
    tb = _row_tile(B, D, mu.dtype)
    num_tiles = pl.cdiv(B, tb)

    if jax.default_backend() == "tpu":
        # ---- TPU path: in-kernel hardware PRNG, scalar-prefetched seed. ----
        seed_arr = jnp.asarray(seed, dtype=jnp.int32).reshape((1,))
        grid_spec = pltpu.PrefetchScalarGridSpec(
            num_scalar_prefetch=1,
            grid=(num_tiles,),
            in_specs=[
                pl.BlockSpec((tb, D), lambda i, seed_ref: (i, 0)),  # mu
                pl.BlockSpec((tb, D), lambda i, seed_ref: (i, 0)),  # sigma
            ],
            out_specs=pl.BlockSpec((tb, D), lambda i, seed_ref: (i, 0)),
        )
        return pl.pallas_call(
            _cond_aug_kernel_tpu,
            out_shape=jax.ShapeDtypeStruct((B, D), mu.dtype),
            grid_spec=grid_spec,
            compiler_params=pltpu.CompilerParams(
                dimension_semantics=("parallel",),  # shard row tiles across TCs (v7x)
            ),
        )(seed_arr, mu, sigma)

    # ---- Fallback path (CPU / interpret): TPU PRNG primitives don't lower here,
    #      so precompute the standard-normal noise and fuse only the FMA. ----
    seed_scalar = jnp.asarray(seed, dtype=jnp.int32).reshape(())
    key = jax.random.PRNGKey(seed_scalar)
    noise = jax.random.normal(key, (B, D), dtype=jnp.float32)
    return pl.pallas_call(
        _cond_aug_kernel_precomputed,
        out_shape=jax.ShapeDtypeStruct((B, D), mu.dtype),
        grid=(num_tiles,),
        in_specs=[
            pl.BlockSpec((tb, D), lambda i: (i, 0)),  # noise
            pl.BlockSpec((tb, D), lambda i: (i, 0)),  # mu
            pl.BlockSpec((tb, D), lambda i: (i, 0)),  # sigma
        ],
        out_specs=pl.BlockSpec((tb, D), lambda i: (i, 0)),
    )(noise, mu, sigma)


# ---------------------------------------------------------------------------
# Demo / smoke test
# ---------------------------------------------------------------------------

if __name__ == "__main__":
    # NOTE: at these tiny conditioning-vector shapes the op is launch-overhead
    # bound; the kernel is written to scale to large (B, D) where it is HBM-bound.
    key = jax.random.PRNGKey(0)
    k_mu, k_sigma = jax.random.split(key)

    B, D = 2, 128  # small conditioning vectors: batch=2, hidden=128
    mu = jax.random.normal(k_mu, (B, D), dtype=jnp.float32)
    sigma = jax.nn.softplus(jax.random.normal(k_sigma, (B, D), dtype=jnp.float32))

    out = conditioning_augmentation(mu, sigma, seed=0)
    out = jax.block_until_ready(out)

    # Sanity: shape/dtype match and values are finite.
    assert out.shape == mu.shape and out.dtype == mu.dtype
    assert bool(jnp.all(jnp.isfinite(out)))

    print("KERNEL_OK")
</pallas_src>

<mosaic_0001>
module attributes {stable_mosaic.version = 11 : i64} {
  func.func @_cond_aug_kernel_precomputed(%arg0: i32, %arg1: memref<2x128xf32, #tpu.memory_space<vmem>>, %arg2: memref<2x128xf32, #tpu.memory_space<vmem>>, %arg3: memref<2x128xf32, #tpu.memory_space<vmem>>, %arg4: memref<2x128xf32, #tpu.memory_space<vmem>>) attributes {dimension_semantics = [#tpu.dimension_semantics<arbitrary>], iteration_bounds = array<i64: 1>, scalar_prefetch = 0 : i64, scratch_operands = 0 : i64, tpu.core_type = #tpu.core_type<tc>, window_params = [{transform_indices = @transform_0, window_bounds = array<i64: 2, 128>}, {transform_indices = @transform_1, window_bounds = array<i64: 2, 128>}, {transform_indices = @transform_2, window_bounds = array<i64: 2, 128>}, {transform_indices = @transform_3, window_bounds = array<i64: 2, 128>}]} {
    %c0 = arith.constant 0 : index
    %c0_0 = arith.constant 0 : index
    %0 = vector.load %arg1[%c0, %c0_0] : memref<2x128xf32, #tpu.memory_space<vmem>>, vector<2x128xf32>
    %c0_1 = arith.constant 0 : index
    %c0_2 = arith.constant 0 : index
    %1 = vector.load %arg3[%c0_1, %c0_2] : memref<2x128xf32, #tpu.memory_space<vmem>>, vector<2x128xf32>
    %2 = arith.mulf %0, %1 : vector<2x128xf32>
    %c0_3 = arith.constant 0 : index
    %c0_4 = arith.constant 0 : index
    %3 = vector.load %arg2[%c0_3, %c0_4] : memref<2x128xf32, #tpu.memory_space<vmem>>, vector<2x128xf32>
    %4 = arith.addf %2, %3 : vector<2x128xf32>
    %c0_5 = arith.constant 0 : index
    %c0_6 = arith.constant 0 : index
    %5 = vector.load %arg4[%c0_5, %c0_6] : memref<2x128xf32, #tpu.memory_space<vmem>>, vector<2x128xf32>
    tpu.vector_store %arg4[%c0_5, %c0_6], %4 {strides = array<i32>} : memref<2x128xf32, #tpu.memory_space<vmem>>, vector<2x128xf32>,
    return
  }
  func.func @transform_0(%arg0: i32) -> (i32, i32) {
    %c0_i32 = arith.constant 0 : i32
    %c0_i32_0 = arith.constant 0 : i32
    return %arg0, %c0_i32 : i32, i32
  }
  func.func @transform_1(%arg0: i32) -> (i32, i32) {
    %c0_i32 = arith.constant 0 : i32
    %c0_i32_0 = arith.constant 0 : i32
    return %arg0, %c0_i32 : i32, i32
  }
  func.func @transform_2(%arg0: i32) -> (i32, i32) {
    %c0_i32 = arith.constant 0 : i32
    %c0_i32_0 = arith.constant 0 : i32
    return %arg0, %c0_i32 : i32, i32
  }
  func.func @transform_3(%arg0: i32) -> (i32, i32) {
    %c0_i32 = arith.constant 0 : i32
    %c0_i32_0 = arith.constant 0 : i32
    return %arg0, %c0_i32 : i32, i32
  }
}

</mosaic_0001>

<llo_original>
// kernel: tpu_custom_call.1
$region0: #{tpu_custom_call.1}
  #allocation0 [shape = 'u32[]', space=smem, size = 0x4, offset = 0x4, fixed_abs, tag = 'smem constant byte address 0x4 - core index']
  #allocation1 [shape = 'u32[144,128]{1,0:T(1,128)}', space=vmem, size = 0x12000, scoped, tag = 'internal scratch']
  %s0 = inlined_call_operand.hbm [shape: f32[2,128], index: 0, kind: input, shape index: {}]
  %s1 = inlined_call_operand.vmem [shape: f32[2,128], index: 1, kind: input, shape index: {}]
  %s2 = inlined_call_operand.vmem [shape: f32[2,128], index: 2, kind: input, shape index: {}]
  %s3 = inlined_call_operand.hbm [shape: f32[2,128], index: 3, kind: output, shape index: {}]
  %s4 = sld [smem:[#allocation0]]
  $region26: #{tpu_custom_call.1} parent=0
    _
  %s6 = ssub.s32 1, %s4
  %s7 = scalar_select 0, %s6, %s4
  $region1: #{tpu_custom_call.1} parent=0
    #allocation2 [shape = 'u8[1024]{0}', space=vmem, size = 0x400, scoped, tag = 'input window, operand 0, single buffered']
    #allocation3 [shape = 's32[1]{0}', space=sflag, size = 0x4, scoped, tag = 'scoped memory for tpu_custom_call.1']
    #allocation4 [shape = 's32[1]{0}', space=sflag, size = 0x4, scoped, tag = 'scoped memory for tpu_custom_call.1']
    #allocation5 [shape = 'u8[1024]{0}', space=vmem, size = 0x400, scoped, tag = 'output window, operand 0, single buffered']
    %8 = vsyncpa [#allocation3], 0
    %9 = vsyncpa [#allocation4], 0
    // Predicated region
    $region2: #{tpu_custom_call.1} parent=1 // pred_check
      _
    $region3: #{tpu_custom_call.1} parent=1 // pred_check_branch
      %11 = sbr.rel (0) target = $region5
    $region4: #{tpu_custom_call.1} parent=1 // pred_region
      %s13 = ssub.s32 32, 32
      %14 = vsyncadd [#allocation3], %s13
      %s16 = sshll.u32 [#allocation2], 4
      %s17 = int_to_ptr.vmem [resolvable:$true] %s16
      %19 = dma.hbm_to_vmem [thread:$0]  %s0, 32, %s17, [#allocation3]
    $region5: #{tpu_custom_call.1} parent=1 // pred_fallthru
      _
    // Predicated region
    $region6: #{tpu_custom_call.1} parent=1 // pred_check
      _
    $region7: #{tpu_custom_call.1} parent=1 // pred_check_branch
      %21 = sbr.rel (0) target = $region9
    $region8: #{tpu_custom_call.1} parent=1 // pred_region
      _
    $region9: #{tpu_custom_call.1} parent=1 // pred_fallthru
      _
    // Predicated region
    $region10: #{tpu_custom_call.1} parent=1 // pred_check
      _
    $region11: #{tpu_custom_call.1} parent=1 // pred_check_branch
      %23 = sbr.rel (0) target = $region13
    $region12: #{tpu_custom_call.1} parent=1 // pred_region
      _
    $region13: #{tpu_custom_call.1} parent=1 // pred_fallthru
      _
    // Predicated region
    $region14: #{tpu_custom_call.1} parent=1 // pred_check
      _
    $region15: #{tpu_custom_call.1} parent=1 // pred_check_branch
      %25 = sbr.rel (0) target = $region17
    $region16: #{tpu_custom_call.1} parent=1 // pred_region
      %26 = dma.done [#allocation3], 32
    $region17: #{tpu_custom_call.1} parent=1 // pred_fallthru
      _
    %v27 = vld [vmem:[#allocation2] sm:$0x3]
    %v28 = vld [vmem:[%s2] sm:$0x3]
    %v29 = vmul.f32 %v27, %v28
    %v30 = vld [vmem:[%s1] sm:$0x3]
    %v31 = vadd.f32 %v29, %v30
    %32 = vst [vmem:[#allocation5] sm:$0x3] %v31
    // Predicated region
    $region18: #{tpu_custom_call.1} parent=1 // pred_check
      _
    $region19: #{tpu_custom_call.1} parent=1 // pred_check_branch
      %34 = sbr.rel (0) target = $region21
    $region20: #{tpu_custom_call.1} parent=1 // pred_region
      %s36 = ssub.s32 32, 32
      %37 = vsyncadd [#allocation4], %s36
      %s39 = sshll.u32 [#allocation5], 4
      %s40 = int_to_ptr.vmem [resolvable:$true] %s39
      %42 = dma.vmem_to_hbm [thread:$0]  %s40, 32, %s3, [#allocation4]
    $region21: #{tpu_custom_call.1} parent=1 // pred_fallthru
      _
    // Predicated region
    $region22: #{tpu_custom_call.1} parent=1 // pred_check
      _
    $region23: #{tpu_custom_call.1} parent=1 // pred_check_branch
      %44 = sbr.rel (0) target = $region25
    $region24: #{tpu_custom_call.1} parent=1 // pred_region
      %45 = dma.done [#allocation4], 32
    $region25: #{tpu_custom_call.1} parent=1 // pred_fallthru
      _
    %46 = vsyncpa [#allocation3], 1
    %47 = vsyncpa [#allocation4], 1

</llo_original>
